<compile_context>
chip_gen: v7x
topology: tpu7x:2x2x1
jax: 0.10.0
libtpu: 0.0.40
codegen_flags: <defaults>
</compile_context>

<pallas_src>
import functools

import jax
import jax.numpy as jnp
from jax.experimental import pallas as pl
from jax.experimental.pallas import tpu as pltpu


def _round_up(x, m):
    return (x + m - 1) // m * m


# ---------------------------------------------------------------------------
# Fused MLP kernel (one row tile per grid step, all layers applied in-kernel)
# ---------------------------------------------------------------------------
def _make_mlp_kernel(num_layers):
    """Builds a kernel: (x_ref, w0, b0, ..., wL-1, bL-1, o_ref)."""

    def kernel(x_ref, *refs):
        o_ref = refs[-1]
        wb = refs[:-1]

        h = x_ref[...]  # (TILE_N, F_pad) bf16

        # Hidden layers: relu(x @ W + b).  bf16 operands on the MXU, f32
        # accumulation, f32 bias-add + ReLU on the VPU, back to bf16 for the
        # next matmul.
        for i in range(num_layers - 1):
            w = wb[2 * i][...]                    # bf16 (in_pad, out_pad)
            b = wb[2 * i + 1][...]                # f32  (1, out_pad) -> row bcast
            acc = jnp.dot(h, w, preferred_element_type=jnp.float32) + b
            h = jnp.maximum(acc, 0.0).astype(jnp.bfloat16)

        # Output layer.  Padded class lanes get logits == -1e30 because the
        # padded bias lanes were pre-baked to -1e30 in the wrapper (padded W
        # columns are zero), so no in-kernel masking is needed.
        w = wb[-2][...]
        b = wb[-1][...]
        logits = jnp.dot(h, w, preferred_element_type=jnp.float32) + b

        # Numerically stable log-softmax over the (padded) class lane axis,
        # all in f32.  Cross-lane max/sum use the XLU; exp/log use the EUP.
        m = jnp.max(logits, axis=1, keepdims=True)
        shifted = logits - m
        lse = jnp.log(jnp.sum(jnp.exp(shifted), axis=1, keepdims=True))
        o_ref[...] = (shifted - lse).astype(o_ref.dtype)

    return kernel


# ---------------------------------------------------------------------------
# Wrapper: pad to TPU-friendly shapes, build grid, slice result
# ---------------------------------------------------------------------------
@functools.partial(jax.jit, static_argnames=("tile_n",))
def mlp_forward(x, params, *, tile_n=512):
    """params: list of (W [in, out], b [out]) per layer.  Returns log-probs [N, C] f32."""
    num_layers = len(params)
    n, f = x.shape
    num_classes = params[-1][0].shape[1]

    # Lane dims padded to multiples of 128; rows to a multiple of the tile.
    # The tile shrinks for small N (keep >= 8 sublanes) so tiny problems don't
    # pad to 512 rows; for large N the 512-row default keeps the pipeline near
    # the HBM roofline.
    f_pad = _round_up(f, 128)
    c_pad = _round_up(num_classes, 128)
    n_tile = min(tile_n, max(_round_up(n, 8), 8))
    n_pad = _round_up(max(n, n_tile), n_tile)

    # bf16 operands for x and W; biases stay f32 (added post-accumulation).
    x_p = (
        jnp.zeros((n_pad, f_pad), jnp.bfloat16)
        .at[:n, :f]
        .set(x.astype(jnp.bfloat16))
    )

    padded_params = []
    in_dim_pad = f_pad
    for li, (w, b) in enumerate(params):
        in_d, out_d = w.shape
        out_pad = _round_up(out_d, 128)
        w_p = (
            jnp.zeros((in_dim_pad, out_pad), jnp.bfloat16)
            .at[:in_d, :out_d]
            .set(w.astype(jnp.bfloat16))
        )
        # Last layer: padded class lanes get a large finite negative bias so
        # the in-kernel log-softmax ignores them without any masking.
        pad_fill = jnp.float32(-1e30) if li == num_layers - 1 else jnp.float32(0.0)
        b_p = (
            jnp.full((1, out_pad), pad_fill, jnp.float32)
            .at[0, :out_d]
            .set(b.astype(jnp.float32))
        )
        padded_params.append((w_p, b_p))
        in_dim_pad = out_pad

    grid = (n_pad // n_tile,)

    # x / output tiled over rows (double-buffered by the pipeline); weights &
    # biases are full blocks with a constant index_map -> single-buffered
    # (pl.Buffered(1)) to halve their resident VMEM (matters on v7x's 64 MiB).
    in_specs = [pl.BlockSpec((n_tile, f_pad), lambda i: (i, 0))]
    flat_wb = []
    for w_p, b_p in padded_params:
        in_specs.append(
            pl.BlockSpec(w_p.shape, lambda i: (0, 0), pipeline_mode=pl.Buffered(1))
        )
        in_specs.append(
            pl.BlockSpec(b_p.shape, lambda i: (0, 0), pipeline_mode=pl.Buffered(1))
        )
        flat_wb.extend([w_p, b_p])
    out_spec = pl.BlockSpec((n_tile, c_pad), lambda i: (i, 0))

    # ---- VMEM budget (bytes): 2x buffered x/out tiles + 1x weights/biases ----
    x_tile_bytes = n_tile * f_pad * 2          # bf16
    o_tile_bytes = n_tile * c_pad * 4          # f32
    wb_bytes = sum(w_p.size * 2 + b_p.size * 4 for w_p, b_p in padded_params)
    vmem_est = 2 * x_tile_bytes + 2 * o_tile_bytes + wb_bytes
    # Generous headroom, but never ask for more than ~48 MiB so the same code
    # fits v7x (64 MiB physical) while still opening up v5e/v6e pipelines.
    vmem_limit = int(min(max(2 * vmem_est, 32 * 1024 * 1024), 48 * 1024 * 1024))

    # ---- Cost estimate so XLA schedules neighbors sensibly ----
    flops = 0
    in_dim_pad = f_pad
    for w_p, _ in padded_params:
        flops += 2 * n_pad * in_dim_pad * w_p.shape[1]
        in_dim_pad = w_p.shape[1]
    transcendentals = n_pad * (c_pad + 1)      # exp per logit + log per row
    bytes_accessed = (
        x_p.size * 2 + wb_bytes + n_pad * c_pad * 4
    )

    kernel = _make_mlp_kernel(num_layers)

    out_padded = pl.pallas_call(
        kernel,
        out_shape=jax.ShapeDtypeStruct((n_pad, c_pad), jnp.float32),
        grid=grid,
        in_specs=in_specs,
        out_specs=out_spec,
        compiler_params=pltpu.CompilerParams(
            dimension_semantics=("parallel",),
            vmem_limit_bytes=vmem_limit,
        ),
        cost_estimate=pl.CostEstimate(
            flops=flops,
            transcendentals=transcendentals,
            bytes_accessed=bytes_accessed,
        ),
    )(x_p, *flat_wb)

    return out_padded[:n, :num_classes]


# ---------------------------------------------------------------------------
# Parameter init mimicking nn.Linear.reset_parameters (uniform +/- 1/sqrt(fan_in))
# ---------------------------------------------------------------------------
def init_mlp_params(key, num_features, hidden, num_classes, num_layers):
    dims = [num_features] + [hidden] * (num_layers - 1) + [num_classes]
    params = []
    for i in range(num_layers):
        fan_in, fan_out = dims[i], dims[i + 1]
        key, kw, kb = jax.random.split(key, 3)
        bound = 1.0 / jnp.sqrt(jnp.float32(fan_in))
        w = jax.random.uniform(kw, (fan_in, fan_out), jnp.float32, -bound, bound)
        b = jax.random.uniform(kb, (fan_out,), jnp.float32, -bound, bound)
        params.append((w, b))
    return params


if __name__ == "__main__":
    # Small shapes consistent with the module's forward pass.
    num_nodes = 8
    num_features = 16
    hidden = 32
    num_classes = 4
    num_layers = 3

    key = jax.random.PRNGKey(0)
    kx, kp = jax.random.split(key)
    x = jax.random.normal(kx, (num_nodes, num_features), jnp.float32)
    params = init_mlp_params(kp, num_features, hidden, num_classes, num_layers)

    out = mlp_forward(x, params)
    jax.block_until_ready(out)

    # Reference check in plain JAX (f32 math).  Tolerance loosened because the
    # kernel feeds bf16 operands to the MXU (f32 accumulation).
    def ref(x, params):
        h = x
        for w, b in params[:-1]:
            h = jnp.maximum(h @ w + b, 0.0)
        w, b = params[-1]
        logits = h @ w + b
        return jax.nn.log_softmax(logits, axis=1)

    expected = ref(x, params)
    assert out.shape == (num_nodes, num_classes)
    assert bool(jnp.allclose(out, expected, atol=5e-2, rtol=5e-2)), (
        "max abs err = %g" % float(jnp.max(jnp.abs(out - expected)))
    )

    print("KERNEL_OK")
</pallas_src>

<mosaic_0001>
module attributes {stable_mosaic.version = 11 : i64} {
  func.func @kernel(%arg0: i32, %arg1: memref<8x128xbf16, #tpu.memory_space<vmem>>, %arg2: memref<128x128xbf16, #tpu.memory_space<vmem>>, %arg3: memref<1x128xf32, #tpu.memory_space<vmem>>, %arg4: memref<128x128xbf16, #tpu.memory_space<vmem>>, %arg5: memref<1x128xf32, #tpu.memory_space<vmem>>, %arg6: memref<128x128xbf16, #tpu.memory_space<vmem>>, %arg7: memref<1x128xf32, #tpu.memory_space<vmem>>, %arg8: memref<8x128xf32, #tpu.memory_space<vmem>>) attributes {dimension_semantics = [#tpu.dimension_semantics<parallel>], iteration_bounds = array<i64: 1>, scalar_prefetch = 0 : i64, scratch_operands = 0 : i64, tpu.core_type = #tpu.core_type<tc>, window_params = [{transform_indices = @transform_0, window_bounds = array<i64: 8, 128>}, {pipeline_mode = #tpu.pipeline_mode<synchronous>, transform_indices = @transform_1, window_bounds = array<i64: 128, 128>}, {pipeline_mode = #tpu.pipeline_mode<synchronous>, transform_indices = @transform_2, window_bounds = array<i64: 1, 128>}, {pipeline_mode = #tpu.pipeline_mode<synchronous>, transform_indices = @transform_3, window_bounds = array<i64: 128, 128>}, {pipeline_mode = #tpu.pipeline_mode<synchronous>, transform_indices = @transform_4, window_bounds = array<i64: 1, 128>}, {pipeline_mode = #tpu.pipeline_mode<synchronous>, transform_indices = @transform_5, window_bounds = array<i64: 128, 128>}, {pipeline_mode = #tpu.pipeline_mode<synchronous>, transform_indices = @transform_6, window_bounds = array<i64: 1, 128>}, {transform_indices = @transform_7, window_bounds = array<i64: 8, 128>}]} {
    %c0 = arith.constant 0 : index
    %c0_0 = arith.constant 0 : index
    %0 = vector.load %arg1[%c0, %c0_0] : memref<8x128xbf16, #tpu.memory_space<vmem>>, vector<8x128xbf16>
    %c0_1 = arith.constant 0 : index
    %c0_2 = arith.constant 0 : index
    %1 = vector.load %arg2[%c0_1, %c0_2] : memref<128x128xbf16, #tpu.memory_space<vmem>>, vector<128x128xbf16>
    %c0_3 = arith.constant 0 : index
    %c0_4 = arith.constant 0 : index
    %2 = vector.load %arg3[%c0_3, %c0_4] : memref<1x128xf32, #tpu.memory_space<vmem>>, vector<1x128xf32>
    %cst = arith.constant dense<0.000000e+00> : vector<8x128xf32>
    %3 = tpu.matmul %0, %1, %cst {dimension_numbers = #tpu.dot_dimension_numbers<[1], [0], [0], [1], [0, 0, 1, 1], [], []>} : vector<8x128xbf16>, vector<128x128xbf16>, vector<8x128xf32> -> vector<8x128xf32>
    %4 = vector.broadcast %2 : vector<1x128xf32> to vector<8x128xf32>
    %5 = arith.addf %3, %4 : vector<8x128xf32>
    %cst_5 = arith.constant 0.000000e+00 : f32
    %6 = vector.broadcast %cst_5 : f32 to vector<8x128xf32>
    %7 = arith.maximumf %5, %6 : vector<8x128xf32>
    %8 = arith.truncf %7 : vector<8x128xf32> to vector<8x128xbf16>
    %c0_6 = arith.constant 0 : index
    %c0_7 = arith.constant 0 : index
    %9 = vector.load %arg4[%c0_6, %c0_7] : memref<128x128xbf16, #tpu.memory_space<vmem>>, vector<128x128xbf16>
    %c0_8 = arith.constant 0 : index
    %c0_9 = arith.constant 0 : index
    %10 = vector.load %arg5[%c0_8, %c0_9] : memref<1x128xf32, #tpu.memory_space<vmem>>, vector<1x128xf32>
    %cst_10 = arith.constant dense<0.000000e+00> : vector<8x128xf32>
    %11 = tpu.matmul %8, %9, %cst_10 {dimension_numbers = #tpu.dot_dimension_numbers<[1], [0], [0], [1], [0, 0, 1, 1], [], []>} : vector<8x128xbf16>, vector<128x128xbf16>, vector<8x128xf32> -> vector<8x128xf32>
    %12 = vector.broadcast %10 : vector<1x128xf32> to vector<8x128xf32>
    %13 = arith.addf %11, %12 : vector<8x128xf32>
    %cst_11 = arith.constant 0.000000e+00 : f32
    %14 = vector.broadcast %cst_11 : f32 to vector<8x128xf32>
    %15 = arith.maximumf %13, %14 : vector<8x128xf32>
    %16 = arith.truncf %15 : vector<8x128xf32> to vector<8x128xbf16>
    %c0_12 = arith.constant 0 : index
    %c0_13 = arith.constant 0 : index
    %17 = vector.load %arg6[%c0_12, %c0_13] : memref<128x128xbf16, #tpu.memory_space<vmem>>, vector<128x128xbf16>
    %c0_14 = arith.constant 0 : index
    %c0_15 = arith.constant 0 : index
    %18 = vector.load %arg7[%c0_14, %c0_15] : memref<1x128xf32, #tpu.memory_space<vmem>>, vector<1x128xf32>
    %cst_16 = arith.constant dense<0.000000e+00> : vector<8x128xf32>
    %19 = tpu.matmul %16, %17, %cst_16 {dimension_numbers = #tpu.dot_dimension_numbers<[1], [0], [0], [1], [0, 0, 1, 1], [], []>} : vector<8x128xbf16>, vector<128x128xbf16>, vector<8x128xf32> -> vector<8x128xf32>
    %20 = vector.broadcast %18 : vector<1x128xf32> to vector<8x128xf32>
    %21 = arith.addf %19, %20 : vector<8x128xf32>
    %cst_17 = arith.constant dense<0xFF800000> : vector<8xf32>
    %22 = vector.multi_reduction <maximumf>, %21, %cst_17 [1] : vector<8x128xf32> to vector<8xf32>
    %23 = vector.shape_cast %22 : vector<8xf32> to vector<8x1xf32>
    %24 = vector.broadcast %23 : vector<8x1xf32> to vector<8x128xf32>
    %25 = arith.subf %21, %24 : vector<8x128xf32>
    %26 = math.exp %25 : vector<8x128xf32>
    %cst_18 = arith.constant dense<0.000000e+00> : vector<8xf32>
    %27 = vector.multi_reduction <add>, %26, %cst_18 [1] : vector<8x128xf32> to vector<8xf32>
    %28 = vector.shape_cast %27 : vector<8xf32> to vector<8x1xf32>
    %29 = math.log %28 : vector<8x1xf32>
    %30 = vector.broadcast %29 : vector<8x1xf32> to vector<8x128xf32>
    %31 = arith.subf %25, %30 : vector<8x128xf32>
    %c0_19 = arith.constant 0 : index
    %c0_20 = arith.constant 0 : index
    %32 = vector.load %arg8[%c0_19, %c0_20] : memref<8x128xf32, #tpu.memory_space<vmem>>, vector<8x128xf32>
    tpu.vector_store %arg8[%c0_19, %c0_20], %31 {strides = array<i32>} : memref<8x128xf32, #tpu.memory_space<vmem>>, vector<8x128xf32>,
    return
  }
  func.func @transform_0(%arg0: i32) -> (i32, i32) {
    %c0_i32 = arith.constant 0 : i32
    %c0_i32_0 = arith.constant 0 : i32
    return %arg0, %c0_i32 : i32, i32
  }
  func.func @transform_1(%arg0: i32) -> (i32, i32) {
    %c0_i32 = arith.constant 0 : i32
    %c0_i32_0 = arith.constant 0 : i32
    %c0_i32_1 = arith.constant 0 : i32
    return %c0_i32, %c0_i32_0 : i32, i32
  }
  func.func @transform_2(%arg0: i32) -> (i32, i32) {
    %c0_i32 = arith.constant 0 : i32
    %c0_i32_0 = arith.constant 0 : i32
    %c0_i32_1 = arith.constant 0 : i32
    return %c0_i32, %c0_i32_0 : i32, i32
  }
  func.func @transform_3(%arg0: i32) -> (i32, i32) {
    %c0_i32 = arith.constant 0 : i32
    %c0_i32_0 = arith.constant 0 : i32
    %c0_i32_1 = arith.constant 0 : i32
    return %c0_i32, %c0_i32_0 : i32, i32
  }
  func.func @transform_4(%arg0: i32) -> (i32, i32) {
    %c0_i32 = arith.constant 0 : i32
    %c0_i32_0 = arith.constant 0 : i32
    %c0_i32_1 = arith.constant 0 : i32
    return %c0_i32, %c0_i32_0 : i32, i32
  }
  func.func @transform_5(%arg0: i32) -> (i32, i32) {
    %c0_i32 = arith.constant 0 : i32
    %c0_i32_0 = arith.constant 0 : i32
    %c0_i32_1 = arith.constant 0 : i32
    return %c0_i32, %c0_i32_0 : i32, i32
  }
  func.func @transform_6(%arg0: i32) -> (i32, i32) {
    %c0_i32 = arith.constant 0 : i32
    %c0_i32_0 = arith.constant 0 : i32
    %c0_i32_1 = arith.constant 0 : i32
    return %c0_i32, %c0_i32_0 : i32, i32
  }
  func.func @transform_7(%arg0: i32) -> (i32, i32) {
    %c0_i32 = arith.constant 0 : i32
    %c0_i32_0 = arith.constant 0 : i32
    return %arg0, %c0_i32 : i32, i32
  }
}

</mosaic_0001>

<llo_original>
// kernel: mlp_forward.1
$region0: #{mlp_forward.1}
  #allocation0 [shape = 'u32[]', space=smem, size = 0x4, offset = 0x4, fixed_abs, tag = 'smem constant byte address 0x4 - core index']
  #allocation1 [shape = 'u32[144,128]{1,0:T(1,128)}', space=vmem, size = 0x12000, scoped, tag = 'internal scratch']
  %s0 = inlined_call_operand.vmem [shape: bf16[8,128], index: 0, kind: input, shape index: {}]
  %s1 = inlined_call_operand.vmem [shape: bf16[128,128], index: 1, kind: input, shape index: {}]
  %s2 = inlined_call_operand.vmem [shape: f32[1,128], index: 2, kind: input, shape index: {}]
  %s3 = inlined_call_operand.vmem [shape: bf16[128,128], index: 3, kind: input, shape index: {}]
  %s4 = inlined_call_operand.vmem [shape: f32[1,128], index: 4, kind: input, shape index: {}]
  %s5 = inlined_call_operand.vmem [shape: bf16[128,128], index: 5, kind: input, shape index: {}]
  %s6 = inlined_call_operand.vmem [shape: f32[1,128], index: 6, kind: input, shape index: {}]
  %s7 = inlined_call_operand.vmem [shape: f32[8,128], index: 7, kind: output, shape index: {}]
  %s8 = sld [smem:[#allocation0]]
  $region38: #{mlp_forward.1} parent=0
    _
  %s10 = ssub.s32 1, %s8
  %s11 = scalar_select 0, %s10, %s8
  // Predicated region
  $region2: #{mlp_forward.1} parent=0 // pred_check
    _
  $region3: #{mlp_forward.1} parent=0 // pred_check_branch
    %13 = sbr.rel (0) target = $region5
  $region4: #{mlp_forward.1} parent=0 // pred_region
    _
  $region5: #{mlp_forward.1} parent=0 // pred_fallthru
    _
  // Predicated region
  $region6: #{mlp_forward.1} parent=0 // pred_check
    _
  $region7: #{mlp_forward.1} parent=0 // pred_check_branch
    %15 = sbr.rel (0) target = $region9
  $region8: #{mlp_forward.1} parent=0 // pred_region
    _
  $region9: #{mlp_forward.1} parent=0 // pred_fallthru
    _
  // Predicated region
  $region10: #{mlp_forward.1} parent=0 // pred_check
    _
  $region11: #{mlp_forward.1} parent=0 // pred_check_branch
    %17 = sbr.rel (0) target = $region13
  $region12: #{mlp_forward.1} parent=0 // pred_region
    _
  $region13: #{mlp_forward.1} parent=0 // pred_fallthru
    _
  // Predicated region
  $region14: #{mlp_forward.1} parent=0 // pred_check
    _
  $region15: #{mlp_forward.1} parent=0 // pred_check_branch
    %19 = sbr.rel (0) target = $region17
  $region16: #{mlp_forward.1} parent=0 // pred_region
    _
  $region17: #{mlp_forward.1} parent=0 // pred_fallthru
    _
  // Predicated region
  $region18: #{mlp_forward.1} parent=0 // pred_check
    _
  $region19: #{mlp_forward.1} parent=0 // pred_check_branch
    %21 = sbr.rel (0) target = $region21
  $region20: #{mlp_forward.1} parent=0 // pred_region
    _
  $region21: #{mlp_forward.1} parent=0 // pred_fallthru
    _
  // Predicated region
  $region22: #{mlp_forward.1} parent=0 // pred_check
    _
  $region23: #{mlp_forward.1} parent=0 // pred_check_branch
    %23 = sbr.rel (0) target = $region25
  $region24: #{mlp_forward.1} parent=0 // pred_region
    _
  $region25: #{mlp_forward.1} parent=0 // pred_fallthru
    _
  // Predicated region
  $region26: #{mlp_forward.1} parent=0 // pred_check
    _
  $region27: #{mlp_forward.1} parent=0 // pred_check_branch
    %25 = sbr.rel (0) target = $region29
  $region28: #{mlp_forward.1} parent=0 // pred_region
    _
  $region29: #{mlp_forward.1} parent=0 // pred_fallthru
    _
  %v27 = vld [vmem:[%s0] sm:$0xf]
  %v28 = vld [vmem:[%s1] sm:$0xf]
  %v29 = vld [vmem:[%s1 + $0x4] sm:$0xf]
  %v30 = vld [vmem:[%s1 + $0x8] sm:$0xf]
  %v31 = vld [vmem:[%s1 + $0xc] sm:$0xf]
  %v32 = vld [vmem:[%s1 + $0x10] sm:$0xf]
  %v33 = vld [vmem:[%s1 + $0x14] sm:$0xf]
  %v34 = vld [vmem:[%s1 + $0x18] sm:$0xf]
  %v35 = vld [vmem:[%s1 + $0x1c] sm:$0xf]
  %v36 = vld [vmem:[%s1 + $0x20] sm:$0xf]
  %v37 = vld [vmem:[%s1 + $0x24] sm:$0xf]
  %v38 = vld [vmem:[%s1 + $0x28] sm:$0xf]
  %v39 = vld [vmem:[%s1 + $0x2c] sm:$0xf]
  %v40 = vld [vmem:[%s1 + $0x30] sm:$0xf]
  %v41 = vld [vmem:[%s1 + $0x34] sm:$0xf]
  %v42 = vld [vmem:[%s1 + $0x38] sm:$0xf]
  %v43 = vld [vmem:[%s1 + $0x3c] sm:$0xf]
  %v44 = vld [vmem:[%s2] sm:$0x1]
  %v46 = vlaneseq
  %v47 = vshrl.u32 %v46, 7
  %v48 = vsub.s32 0, %v47
  %v49 = vrot.slane %v44, %v48
  %v67 = vunpack.c.l.b16 %v28
  %v68 = vunpack.c.l.b16 %v29
  %v69 = vunpack.c.l.b16 %v30
  %v70 = vunpack.c.l.b16 %v31
  %v71 = vunpack.c.l.b16 %v32
  %v72 = vunpack.c.l.b16 %v33
  %v73 = vunpack.c.l.b16 %v34
  %v74 = vunpack.c.l.b16 %v35
  %v75 = vunpack.c.l.b16 %v36
  %v76 = vunpack.c.l.b16 %v37
  %v77 = vunpack.c.l.b16 %v38
  %v78 = vunpack.c.l.b16 %v39
  %v79 = vunpack.c.l.b16 %v40
  %v80 = vunpack.c.l.b16 %v41
  %v81 = vunpack.c.l.b16 %v42
  %v82 = vunpack.c.l.b16 %v43
  %v83 = vpack.c.b16 %v68, %v67
  %v84 = vpack.c.b16 %v70, %v69
  %v85 = vpack.c.b16 %v72, %v71
  %v86 = vpack.c.b16 %v74, %v73
  %v87 = vpack.c.b16 %v76, %v75
  %v88 = vpack.c.b16 %v78, %v77
  %v89 = vpack.c.b16 %v80, %v79
  %v90 = vpack.c.b16 %v82, %v81
  %99 = vmatprep.subr.bf16.mxu0 0
  %100 = vmatpush1.bf16.msra.mxu0 %v83
  %101 = vmatprep.subr.bf16.mxu0 0
  %102 = vmatpush1.bf16.msra.mxu0 %v84
  %103 = vmatprep.subr.bf16.mxu0 0
  %104 = vmatpush1.bf16.msra.mxu0 %v85
  %105 = vmatprep.subr.bf16.mxu0 0
  %106 = vmatpush1.bf16.msra.mxu0 %v86
  %107 = vmatprep.subr.bf16.mxu0 0
  %108 = vmatpush1.bf16.msra.mxu0 %v87
  %109 = vmatprep.subr.bf16.mxu0 0
  %110 = vmatpush1.bf16.msra.mxu0 %v88
  %111 = vmatprep.subr.bf16.mxu0 0
  %112 = vmatpush1.bf16.msra.mxu0 %v89
  %113 = vmatprep.subr.bf16.mxu0 0
  %114 = vmatpush1.bf16.msra.mxu0 %v90
  %115 = vmatprep.subr.bf16.mxu0 0
  %116 = vmatpush1.bf16.msra.mxu0 0
  %117 = vmatprep.subr.bf16.mxu0 0
  %118 = vmatpush1.bf16.msra.mxu0 0
  %119 = vmatprep.subr.bf16.mxu0 0
  %120 = vmatpush1.bf16.msra.mxu0 0
  %121 = vmatprep.subr.bf16.mxu0 0
  %122 = vmatpush1.bf16.msra.mxu0 0
  %123 = vmatprep.subr.bf16.mxu0 0
  %124 = vmatpush1.bf16.msra.mxu0 0
  %125 = vmatprep.subr.bf16.mxu0 0
  %126 = vmatpush1.bf16.msra.mxu0 0
  %127 = vmatprep.subr.bf16.mxu0 0
  %128 = vmatpush1.bf16.msra.mxu0 0
  %129 = vmatprep.subr.bf16.mxu0 0
  %130 = vmatpush1.bf16.msra.mxu0 0
  %131 = vmatprep.mubr.bf16.mxu0 0
  %132 = vmatmul.mubr.bf16.gmra.mrb[0].mxu0 %v27
  %v133 = vpop.f32.mrb[0].mxu0
  %v134 = vadd.f32 %v49, %v133
  %v135 = vpop.f32.mrb[0].mxu0
  %v136 = vpop.f32.mrb[0].mxu0
  %v137 = vpop.f32.mrb[0].mxu0
  %138 = vdwg.mxu0
  %v139 = vmax.f32 %v134, 0.0
  %v140 = vpack.c.bf16 %v139, %v139
  %v141 = vld [vmem:[%s3] sm:$0xf]
  %v142 = vld [vmem:[%s3 + $0x4] sm:$0xf]
  %v143 = vld [vmem:[%s3 + $0x8] sm:$0xf]
  %v144 = vld [vmem:[%s3 + $0xc] sm:$0xf]
  %v145 = vld [vmem:[%s3 + $0x10] sm:$0xf]
  %v146 = vld [vmem:[%s3 + $0x14] sm:$0xf]
  %v147 = vld [vmem:[%s3 + $0x18] sm:$0xf]
  %v148 = vld [vmem:[%s3 + $0x1c] sm:$0xf]
  %v149 = vld [vmem:[%s3 + $0x20] sm:$0xf]
  %v150 = vld [vmem:[%s3 + $0x24] sm:$0xf]
  %v151 = vld [vmem:[%s3 + $0x28] sm:$0xf]
  %v152 = vld [vmem:[%s3 + $0x2c] sm:$0xf]
  %v153 = vld [vmem:[%s3 + $0x30] sm:$0xf]
  %v154 = vld [vmem:[%s3 + $0x34] sm:$0xf]
  %v155 = vld [vmem:[%s3 + $0x38] sm:$0xf]
  %v156 = vld [vmem:[%s3 + $0x3c] sm:$0xf]
  %v157 = vld [vmem:[%s4] sm:$0x1]
  %v159 = vlaneseq
  %v160 = vshrl.u32 %v159, 7
  %v161 = vsub.s32 0, %v160
  %v162 = vrot.slane %v157, %v161
  %v180 = vunpack.c.l.b16 %v141
  %v181 = vunpack.c.l.b16 %v142
  %v182 = vunpack.c.l.b16 %v143
  %v183 = vunpack.c.l.b16 %v144
  %v184 = vunpack.c.l.b16 %v145
  %v185 = vunpack.c.l.b16 %v146
  %v186 = vunpack.c.l.b16 %v147
  %v187 = vunpack.c.l.b16 %v148
  %v188 = vunpack.c.l.b16 %v149
  %v189 = vunpack.c.l.b16 %v150
  %v190 = vunpack.c.l.b16 %v151
  %v191 = vunpack.c.l.b16 %v152
  %v192 = vunpack.c.l.b16 %v153
  %v193 = vunpack.c.l.b16 %v154
  %v194 = vunpack.c.l.b16 %v155
  %v195 = vunpack.c.l.b16 %v156
  %v196 = vpack.c.b16 %v181, %v180
  %v197 = vpack.c.b16 %v183, %v182
  %v198 = vpack.c.b16 %v185, %v184
  %v199 = vpack.c.b16 %v187, %v186
  %v200 = vpack.c.b16 %v189, %v188
  %v201 = vpack.c.b16 %v191, %v190
  %v202 = vpack.c.b16 %v193, %v192
  %v203 = vpack.c.b16 %v195, %v194
  %212 = vmatprep.subr.bf16.mxu0 0
  %213 = vmatpush1.bf16.msra.mxu0 %v196
  %214 = vmatprep.subr.bf16.mxu0 0
  %215 = vmatpush1.bf16.msra.mxu0 %v197
  %216 = vmatprep.subr.bf16.mxu0 0
  %217 = vmatpush1.bf16.msra.mxu0 %v198
  %218 = vmatprep.subr.bf16.mxu0 0
  %219 = vmatpush1.bf16.msra.mxu0 %v199
  %220 = vmatprep.subr.bf16.mxu0 0
  %221 = vmatpush1.bf16.msra.mxu0 %v200
  %222 = vmatprep.subr.bf16.mxu0 0
  %223 = vmatpush1.bf16.msra.mxu0 %v201
  %224 = vmatprep.subr.bf16.mxu0 0
  %225 = vmatpush1.bf16.msra.mxu0 %v202
  %226 = vmatprep.subr.bf16.mxu0 0
  %227 = vmatpush1.bf16.msra.mxu0 %v203
  %228 = vmatprep.subr.bf16.mxu0 0
  %229 = vmatpush1.bf16.msra.mxu0 0
  %230 = vmatprep.subr.bf16.mxu0 0
  %231 = vmatpush1.bf16.msra.mxu0 0
  %232 = vmatprep.subr.bf16.mxu0 0
  %233 = vmatpush1.bf16.msra.mxu0 0
  %234 = vmatprep.subr.bf16.mxu0 0
  %235 = vmatpush1.bf16.msra.mxu0 0
  %236 = vmatprep.subr.bf16.mxu0 0
  %237 = vmatpush1.bf16.msra.mxu0 0
  %238 = vmatprep.subr.bf16.mxu0 0
  %239 = vmatpush1.bf16.msra.mxu0 0
  %240 = vmatprep.subr.bf16.mxu0 0
  %241 = vmatpush1.bf16.msra.mxu0 0
  %242 = vmatprep.subr.bf16.mxu0 0
  %243 = vmatpush1.bf16.msra.mxu0 0
  %244 = vmatprep.mubr.bf16.mxu0 0
  %245 = vmatmul.mubr.bf16.gmra.mrb[0].mxu0 %v140
  %v246 = vpop.f32.mrb[0].mxu0
  %v247 = vadd.f32 %v162, %v246
  %v248 = vpop.f32.mrb[0].mxu0
  %v249 = vpop.f32.mrb[0].mxu0
  %v250 = vpop.f32.mrb[0].mxu0
  %251 = vdwg.mxu0
  %v252 = vmax.f32 %v247, 0.0
  %v253 = vpack.c.bf16 %v252, %v252
  %v254 = vld [vmem:[%s5] sm:$0xf]
  %v255 = vld [vmem:[%s5 + $0x4] sm:$0xf]
  %v256 = vld [vmem:[%s5 + $0x8] sm:$0xf]
  %v257 = vld [vmem:[%s5 + $0xc] sm:$0xf]
  %v258 = vld [vmem:[%s5 + $0x10] sm:$0xf]
  %v259 = vld [vmem:[%s5 + $0x14] sm:$0xf]
  %v260 = vld [vmem:[%s5 + $0x18] sm:$0xf]
  %v261 = vld [vmem:[%s5 + $0x1c] sm:$0xf]
  %v262 = vld [vmem:[%s5 + $0x20] sm:$0xf]
  %v263 = vld [vmem:[%s5 + $0x24] sm:$0xf]
  %v264 = vld [vmem:[%s5 + $0x28] sm:$0xf]
  %v265 = vld [vmem:[%s5 + $0x2c] sm:$0xf]
  %v266 = vld [vmem:[%s5 + $0x30] sm:$0xf]
  %v267 = vld [vmem:[%s5 + $0x34] sm:$0xf]
  %v268 = vld [vmem:[%s5 + $0x38] sm:$0xf]
  %v269 = vld [vmem:[%s5 + $0x3c] sm:$0xf]
  %v270 = vld [vmem:[%s6] sm:$0x1]
  %v272 = vlaneseq
  %v273 = vshrl.u32 %v272, 7
  %v274 = vsub.s32 0, %v273
  %v275 = vrot.slane %v270, %v274
  %v293 = vunpack.c.l.b16 %v254
  %v294 = vunpack.c.l.b16 %v255
  %v295 = vunpack.c.l.b16 %v256
  %v296 = vunpack.c.l.b16 %v257
  %v297 = vunpack.c.l.b16 %v258
  %v298 = vunpack.c.l.b16 %v259
  %v299 = vunpack.c.l.b16 %v260
  %v300 = vunpack.c.l.b16 %v261
  %v301 = vunpack.c.l.b16 %v262
  %v302 = vunpack.c.l.b16 %v263
  %v303 = vunpack.c.l.b16 %v264
  %v304 = vunpack.c.l.b16 %v265
  %v305 = vunpack.c.l.b16 %v266
  %v306 = vunpack.c.l.b16 %v267
  %v307 = vunpack.c.l.b16 %v268
  %v308 = vunpack.c.l.b16 %v269
  %v309 = vpack.c.b16 %v294, %v293
  %v310 = vpack.c.b16 %v296, %v295
  %v311 = vpack.c.b16 %v298, %v297
  %v312 = vpack.c.b16 %v300, %v299
  %v313 = vpack.c.b16 %v302, %v301
  %v314 = vpack.c.b16 %v304, %v303
  %v315 = vpack.c.b16 %v306, %v305
  %v316 = vpack.c.b16 %v308, %v307
  %325 = vmatprep.subr.bf16.mxu0 0
  %326 = vmatpush1.bf16.msra.mxu0 %v309
  %327 = vmatprep.subr.bf16.mxu0 0
  %328 = vmatpush1.bf16.msra.mxu0 %v310
  %329 = vmatprep.subr.bf16.mxu0 0
  %330 = vmatpush1.bf16.msra.mxu0 %v311
  %331 = vmatprep.subr.bf16.mxu0 0
  %332 = vmatpush1.bf16.msra.mxu0 %v312
  %333 = vmatprep.subr.bf16.mxu0 0
  %334 = vmatpush1.bf16.msra.mxu0 %v313
  %335 = vmatprep.subr.bf16.mxu0 0
  %336 = vmatpush1.bf16.msra.mxu0 %v314
  %337 = vmatprep.subr.bf16.mxu0 0
  %338 = vmatpush1.bf16.msra.mxu0 %v315
  %339 = vmatprep.subr.bf16.mxu0 0
  %340 = vmatpush1.bf16.msra.mxu0 %v316
  %341 = vmatprep.subr.bf16.mxu0 0
  %342 = vmatpush1.bf16.msra.mxu0 0
  %343 = vmatprep.subr.bf16.mxu0 0
  %344 = vmatpush1.bf16.msra.mxu0 0
  %345 = vmatprep.subr.bf16.mxu0 0
  %346 = vmatpush1.bf16.msra.mxu0 0
  %347 = vmatprep.subr.bf16.mxu0 0
  %348 = vmatpush1.bf16.msra.mxu0 0
  %349 = vmatprep.subr.bf16.mxu0 0
  %350 = vmatpush1.bf16.msra.mxu0 0
  %351 = vmatprep.subr.bf16.mxu0 0
  %352 = vmatpush1.bf16.msra.mxu0 0
  %353 = vmatprep.subr.bf16.mxu0 0
  %354 = vmatpush1.bf16.msra.mxu0 0
  %355 = vmatprep.subr.bf16.mxu0 0
  %356 = vmatpush1.bf16.msra.mxu0 0
  %357 = vmatprep.mubr.bf16.mxu0 0
  %358 = vmatmul.mubr.bf16.gmra.mrb[0].mxu0 %v253
  %v359 = vpop.f32.mrb[0].mxu0
  %v360 = vadd.f32 %v275, %v359
  %v361 = vpop.f32.mrb[0].mxu0
  %v362 = vpop.f32.mrb[0].mxu0
  %v363 = vpop.f32.mrb[0].mxu0
  %364 = vdwg.mxu0
  %365 = vmax.xlane.f32.xlu0 %v360
  %v366 = vpop.xlane.xlu0 %365
  %v367 = vsub.f32 %v360, %v366
  %v368 = vmul.f32 %v367, 1.442695
  %v369 = vpow.pop %v368
  %370 = vadd.xlane.f32.xlu0 %v369
  %v371 = vpop.xlane.xlu0 %370
  %v372 = vlog2.pop %v371
  %v373 = vmul.f32 %v372, 0.6931472
  %v374 = vsub.f32 %v367, %v373
  %375 = vst [vmem:[%s7] sm:$0xff] %v374
  // Predicated region
  $region30: #{mlp_forward.1} parent=0 // pred_check
    _
  $region31: #{mlp_forward.1} parent=0 // pred_check_branch
    %377 = sbr.rel (0) target = $region33
  $region32: #{mlp_forward.1} parent=0 // pred_region
    _
  $region33: #{mlp_forward.1} parent=0 // pred_fallthru
    _
  // Predicated region
  $region34: #{mlp_forward.1} parent=0 // pred_check
    _
  $region35: #{mlp_forward.1} parent=0 // pred_check_branch
    %379 = sbr.rel (0) target = $region37
  $region36: #{mlp_forward.1} parent=0 // pred_region
    _
  $region37: #{mlp_forward.1} parent=0 // pred_fallthru
    _

</llo_original>
